<compile_context>
chip_gen: v5e
topology: v5e:2x2
jax: 0.10.0
libtpu: 0.0.40
codegen_flags: <defaults>
</compile_context>

<pallas_src>
import jax
import jax.numpy as jnp
from jax.experimental import pallas as pl
from jax.experimental.pallas import tpu as pltpu

LANE = 128      # lane width / padded feature dim
HIDDEN1 = 128
HIDDEN2 = 64


def _round_up(n, m):
    return ((n + m - 1) // m) * m


def _choose_block_b(B):
    """Pick the batch tile size.

    - B <= 128: single small tile rounded to 16 rows (bf16 sublane minimum)
      -> low-latency path, minimal padded output writes.
    - B  > 128: throughput path. Target the mem-bound sweet spot (~512 rows
      per tile) but never let the grid collapse to a single step, so v7x's
      two TensorCores each get at least one tile.
    """
    if B <= 128:
        return max(16, _round_up(B, 16))
    half = _round_up(pl.cdiv(B, 2), 128)
    return min(512, half)


def chatbot_kernel(x_ref, w_ref, b_ref, o_ref):
    # x_ref: [TB, in_pad]   f32   (narrow, unpadded-feature input tile)
    # w_ref: [3, 128, 128]  bf16  packed (w1 | w2 | w3), each [in_pad, out_pad]
    # b_ref: [3, 1, 128]    f32   packed (b1 | b2 | b3)
    # o_ref: [TB, 128]      bf16  (padded logits)
    in_pad = x_ref.shape[-1]
    x = x_ref[...].astype(jnp.bfloat16)          # cast in-kernel (no extra HBM pass)

    # fc1 + ReLU   (dropout in eval mode == identity); bias/ReLU in f32 (v5e-safe)
    w1 = w_ref[0][:in_pad, :]                    # static sublane slice of resident weights
    h1 = jnp.dot(x, w1, preferred_element_type=jnp.float32) + b_ref[0]
    h1 = jnp.maximum(h1, 0.0).astype(jnp.bfloat16)

    # fc2 + ReLU   (dropout in eval mode == identity)
    h2 = jnp.dot(h1, w_ref[1], preferred_element_type=jnp.float32) + b_ref[1]
    h2 = jnp.maximum(h2, 0.0).astype(jnp.bfloat16)

    # fc3 (no activation), stored as bf16
    out = jnp.dot(h2, w_ref[2], preferred_element_type=jnp.float32) + b_ref[2]
    o_ref[...] = out.astype(o_ref.dtype)


def chatbot_forward(x, params, *, block_b=None):
    """x: [B, input_size] float32. params: dict from init_params (packed/padded).

    Returns f32 logits [B, output_size] (final cast/slice only touches the
    tiny logits block; the kernel's HBM output stream is bf16).
    """
    B, in_size = x.shape
    out_size = params["out_size"]
    w, b = params["w"], params["b"]

    if block_b is None:
        block_b = _choose_block_b(B)
    b_pad = _round_up(B, block_b)
    in_pad = _round_up(max(in_size, 8), 8)       # keep the weight slice sublane-aligned

    # Structural pad only (rows to the tile, features to a multiple of 8).
    # No materialized f32->bf16 copy: the dtype cast happens inside the kernel.
    x_pad = x
    if (b_pad, in_pad) != (B, in_size):
        x_pad = jnp.pad(x, ((0, b_pad - B), (0, in_pad - in_size)))

    grid = (b_pad // block_b,)

    flops = 2 * b_pad * (in_pad * HIDDEN1 + HIDDEN1 * HIDDEN2 + HIDDEN2 * LANE)
    bytes_accessed = (x_pad.size * 4) + (w.size * 2) + (b.size * 4) + (b_pad * LANE * 2)

    out_padded = pl.pallas_call(
        chatbot_kernel,
        out_shape=jax.ShapeDtypeStruct((b_pad, LANE), jnp.bfloat16),
        grid=grid,
        in_specs=[
            # x tiles pipeline over the batch grid (f32, narrow feature axis)
            pl.BlockSpec((block_b, in_pad), lambda i: (i, 0)),
            # packed weights / biases: constant block index -> DMA'd once,
            # VMEM-resident across grid steps
            pl.BlockSpec(w.shape, lambda i: (0, 0, 0)),
            pl.BlockSpec(b.shape, lambda i: (0, 0, 0)),
        ],
        out_specs=pl.BlockSpec((block_b, LANE), lambda i: (i, 0)),
        compiler_params=pltpu.CompilerParams(
            dimension_semantics=("parallel",)),  # shard batch tiles across TCs (v7x)
        cost_estimate=pl.CostEstimate(
            flops=flops, transcendentals=0, bytes_accessed=bytes_accessed),
    )(x_pad, w, b)

    # Consumers that can work on padded bf16 logits should use out_padded
    # directly; this slice/cast only touches [B, out_size] elements.
    return out_padded[:B, :out_size].astype(jnp.float32)


def init_params(key, input_size, output_size):
    """PyTorch nn.Linear-style init; weights stored [in, out] so y = x @ W + b.

    Weights/biases are zero-padded to 128 lanes and coalesced into two
    contiguous buffers:
      w: [3, 128, 128] bfloat16   (w1 | w2 | w3)
      b: [3, 1, 128]   float32    (b1 | b2 | b3)
    Zero padding is exact: padded input cols are zero, padded hidden cols relu
    to zero, padded output cols are zero and sliced off in the wrapper.
    """
    assert input_size <= LANE and output_size <= LANE, \
        "packed single-tile layout assumes feature dims <= 128 (see TODO above)"

    def linear(key, fan_in, fan_out):
        kw, kb = jax.random.split(key)
        bound = 1.0 / jnp.sqrt(fan_in)
        w = jax.random.uniform(kw, (fan_in, fan_out), jnp.float32, -bound, bound)
        bias = jax.random.uniform(kb, (fan_out,), jnp.float32, -bound, bound)
        return w, bias

    k1, k2, k3 = jax.random.split(key, 3)
    w1, b1 = linear(k1, input_size, HIDDEN1)
    w2, b2 = linear(k2, HIDDEN1, HIDDEN2)
    w3, b3 = linear(k3, HIDDEN2, output_size)

    def pad_w(w):
        buf = jnp.zeros((LANE, LANE), jnp.float32)
        return buf.at[: w.shape[0], : w.shape[1]].set(w)

    def pad_b(bias):
        buf = jnp.zeros((LANE,), jnp.float32)
        return buf.at[: bias.shape[0]].set(bias)

    w_packed = jnp.stack([pad_w(w1), pad_w(w2), pad_w(w3)]).astype(jnp.bfloat16)
    b_packed = jnp.stack([pad_b(b1), pad_b(b2), pad_b(b3)])[:, None, :]  # [3,1,128]

    return {
        "w": w_packed,
        "b": b_packed,
        "out_size": output_size,
        "raw": {"w1": w1, "b1": b1, "w2": w2, "b2": b2, "w3": w3, "b3": b3},
    }


if __name__ == "__main__":
    input_size = 32   # e.g. bag-of-words vocabulary size
    output_size = 16  # number of intent classes
    batch = 8

    key = jax.random.PRNGKey(0)
    kx, kp = jax.random.split(key)
    x = jax.random.normal(kx, (batch, input_size), dtype=jnp.float32)
    params = init_params(kp, input_size, output_size)

    out = chatbot_forward(x, params)
    out = jax.block_until_ready(out)
    assert out.shape == (batch, output_size)

    # Reference 1: same bf16-weight / f32-accumulate / bf16-store recipe in plain JAX.
    r = params["raw"]
    xb = x.astype(jnp.bfloat16)
    w1b, w2b, w3b = (r["w1"].astype(jnp.bfloat16),
                     r["w2"].astype(jnp.bfloat16),
                     r["w3"].astype(jnp.bfloat16))
    h1 = jnp.maximum(jnp.dot(xb, w1b, preferred_element_type=jnp.float32) + r["b1"], 0.0)
    h1 = h1.astype(jnp.bfloat16)
    h2 = jnp.maximum(jnp.dot(h1, w2b, preferred_element_type=jnp.float32) + r["b2"], 0.0)
    h2 = h2.astype(jnp.bfloat16)
    ref_bf16 = (jnp.dot(h2, w3b, preferred_element_type=jnp.float32) + r["b3"])
    ref_bf16 = ref_bf16.astype(jnp.bfloat16).astype(jnp.float32)
    assert jnp.allclose(out, ref_bf16, atol=3e-2, rtol=3e-2), \
        float(jnp.max(jnp.abs(out - ref_bf16)))

    # Reference 2: full-f32 PyTorch-equivalent math (loose tol due to bf16 casts).
    ref_f32 = jnp.maximum(x @ r["w1"] + r["b1"], 0.0)
    ref_f32 = jnp.maximum(ref_f32 @ r["w2"] + r["b2"], 0.0)
    ref_f32 = ref_f32 @ r["w3"] + r["b3"]
    assert jnp.allclose(out, ref_f32, atol=2e-1, rtol=2e-1)

    # Sanity-check the large-batch / multi-tile path (grid >= 2, 128-row tiles).
    x_big = jax.random.normal(kx, (300, input_size), dtype=jnp.float32)
    out_big = jax.block_until_ready(chatbot_forward(x_big, params))
    assert out_big.shape == (300, output_size)

    print("KERNEL_OK")
</pallas_src>

<mosaic_0001>
module attributes {stable_mosaic.version = 11 : i64} {
  func.func @chatbot_kernel(%arg0: i32, %arg1: memref<16x32xf32, #tpu.memory_space<vmem>>, %arg2: memref<3x128x128xbf16, #tpu.memory_space<vmem>>, %arg3: memref<3x1x128xf32, #tpu.memory_space<vmem>>, %arg4: memref<16x128xbf16, #tpu.memory_space<vmem>>) attributes {dimension_semantics = [#tpu.dimension_semantics<parallel>], iteration_bounds = array<i64: 1>, scalar_prefetch = 0 : i64, scratch_operands = 0 : i64, tpu.core_type = #tpu.core_type<tc>, window_params = [{transform_indices = @transform_0, window_bounds = array<i64: 16, 32>}, {pipeline_mode = #tpu.pipeline_mode<synchronous>, transform_indices = @transform_1, window_bounds = array<i64: 3, 128, 128>}, {pipeline_mode = #tpu.pipeline_mode<synchronous>, transform_indices = @transform_2, window_bounds = array<i64: 3, 1, 128>}, {transform_indices = @transform_3, window_bounds = array<i64: 16, 128>}]} {
    %c0 = arith.constant 0 : index
    %c0_0 = arith.constant 0 : index
    %0 = vector.load %arg1[%c0, %c0_0] : memref<16x32xf32, #tpu.memory_space<vmem>>, vector<16x32xf32>
    %1 = arith.truncf %0 : vector<16x32xf32> to vector<16x32xbf16>
    %c0_1 = arith.constant 0 : index
    %c0_2 = arith.constant 0 : index
    %c0_3 = arith.constant 0 : index
    %2 = vector.load %arg2[%c0_1, %c0_2, %c0_3] : memref<3x128x128xbf16, #tpu.memory_space<vmem>>, vector<1x128x128xbf16>
    %3 = vector.shape_cast %2 : vector<1x128x128xbf16> to vector<128x128xbf16>
    %4 = vector.extract_strided_slice %3 {offsets = [0, 0], sizes = [32, 128], strides = [1, 1]} : vector<128x128xbf16> to vector<32x128xbf16>
    %cst = arith.constant dense<0.000000e+00> : vector<16x128xf32>
    %5 = tpu.matmul %1, %4, %cst {dimension_numbers = #tpu.dot_dimension_numbers<[1], [0], [0], [1], [0, 0, 1, 1], [], []>} : vector<16x32xbf16>, vector<32x128xbf16>, vector<16x128xf32> -> vector<16x128xf32>
    %c0_4 = arith.constant 0 : index
    %c0_5 = arith.constant 0 : index
    %c0_6 = arith.constant 0 : index
    %6 = vector.load %arg3[%c0_4, %c0_5, %c0_6] : memref<3x1x128xf32, #tpu.memory_space<vmem>>, vector<1x1x128xf32>
    %7 = vector.shape_cast %6 : vector<1x1x128xf32> to vector<1x128xf32>
    %8 = vector.broadcast %7 : vector<1x128xf32> to vector<16x128xf32>
    %9 = arith.addf %5, %8 : vector<16x128xf32>
    %cst_7 = arith.constant 0.000000e+00 : f32
    %10 = vector.broadcast %cst_7 : f32 to vector<16x128xf32>
    %11 = arith.maximumf %9, %10 : vector<16x128xf32>
    %12 = arith.truncf %11 : vector<16x128xf32> to vector<16x128xbf16>
    %c1 = arith.constant 1 : index
    %c0_8 = arith.constant 0 : index
    %c0_9 = arith.constant 0 : index
    %13 = vector.load %arg2[%c1, %c0_8, %c0_9] : memref<3x128x128xbf16, #tpu.memory_space<vmem>>, vector<1x128x128xbf16>
    %14 = vector.shape_cast %13 : vector<1x128x128xbf16> to vector<128x128xbf16>
    %cst_10 = arith.constant dense<0.000000e+00> : vector<16x128xf32>
    %15 = tpu.matmul %12, %14, %cst_10 {dimension_numbers = #tpu.dot_dimension_numbers<[1], [0], [0], [1], [0, 0, 1, 1], [], []>} : vector<16x128xbf16>, vector<128x128xbf16>, vector<16x128xf32> -> vector<16x128xf32>
    %c1_11 = arith.constant 1 : index
    %c0_12 = arith.constant 0 : index
    %c0_13 = arith.constant 0 : index
    %16 = vector.load %arg3[%c1_11, %c0_12, %c0_13] : memref<3x1x128xf32, #tpu.memory_space<vmem>>, vector<1x1x128xf32>
    %17 = vector.shape_cast %16 : vector<1x1x128xf32> to vector<1x128xf32>
    %18 = vector.broadcast %17 : vector<1x128xf32> to vector<16x128xf32>
    %19 = arith.addf %15, %18 : vector<16x128xf32>
    %cst_14 = arith.constant 0.000000e+00 : f32
    %20 = vector.broadcast %cst_14 : f32 to vector<16x128xf32>
    %21 = arith.maximumf %19, %20 : vector<16x128xf32>
    %22 = arith.truncf %21 : vector<16x128xf32> to vector<16x128xbf16>
    %c2 = arith.constant 2 : index
    %c0_15 = arith.constant 0 : index
    %c0_16 = arith.constant 0 : index
    %23 = vector.load %arg2[%c2, %c0_15, %c0_16] : memref<3x128x128xbf16, #tpu.memory_space<vmem>>, vector<1x128x128xbf16>
    %24 = vector.shape_cast %23 : vector<1x128x128xbf16> to vector<128x128xbf16>
    %cst_17 = arith.constant dense<0.000000e+00> : vector<16x128xf32>
    %25 = tpu.matmul %22, %24, %cst_17 {dimension_numbers = #tpu.dot_dimension_numbers<[1], [0], [0], [1], [0, 0, 1, 1], [], []>} : vector<16x128xbf16>, vector<128x128xbf16>, vector<16x128xf32> -> vector<16x128xf32>
    %c2_18 = arith.constant 2 : index
    %c0_19 = arith.constant 0 : index
    %c0_20 = arith.constant 0 : index
    %26 = vector.load %arg3[%c2_18, %c0_19, %c0_20] : memref<3x1x128xf32, #tpu.memory_space<vmem>>, vector<1x1x128xf32>
    %27 = vector.shape_cast %26 : vector<1x1x128xf32> to vector<1x128xf32>
    %28 = vector.broadcast %27 : vector<1x128xf32> to vector<16x128xf32>
    %29 = arith.addf %25, %28 : vector<16x128xf32>
    %30 = arith.truncf %29 : vector<16x128xf32> to vector<16x128xbf16>
    %c0_21 = arith.constant 0 : index
    %c0_22 = arith.constant 0 : index
    %31 = vector.load %arg4[%c0_21, %c0_22] : memref<16x128xbf16, #tpu.memory_space<vmem>>, vector<16x128xbf16>
    tpu.vector_store %arg4[%c0_21, %c0_22], %30 {strides = array<i32>} : memref<16x128xbf16, #tpu.memory_space<vmem>>, vector<16x128xbf16>,
    return
  }
  func.func @transform_0(%arg0: i32) -> (i32, i32) {
    %c0_i32 = arith.constant 0 : i32
    %c0_i32_0 = arith.constant 0 : i32
    return %arg0, %c0_i32 : i32, i32
  }
  func.func @transform_1(%arg0: i32) -> (i32, i32, i32) {
    %c0_i32 = arith.constant 0 : i32
    %c0_i32_0 = arith.constant 0 : i32
    %c0_i32_1 = arith.constant 0 : i32
    %c0_i32_2 = arith.constant 0 : i32
    return %c0_i32, %c0_i32_0, %c0_i32_1 : i32, i32, i32
  }
  func.func @transform_2(%arg0: i32) -> (i32, i32, i32) {
    %c0_i32 = arith.constant 0 : i32
    %c0_i32_0 = arith.constant 0 : i32
    %c0_i32_1 = arith.constant 0 : i32
    %c0_i32_2 = arith.constant 0 : i32
    return %c0_i32, %c0_i32_0, %c0_i32_1 : i32, i32, i32
  }
  func.func @transform_3(%arg0: i32) -> (i32, i32) {
    %c0_i32 = arith.constant 0 : i32
    %c0_i32_0 = arith.constant 0 : i32
    return %arg0, %c0_i32 : i32, i32
  }
}

</mosaic_0001>

<llo_original>
// kernel: tpu_custom_call.1
$region0: #{tpu_custom_call.1}
  #allocation0 [shape = 'u32[]', space=smem, size = 0x4, offset = 0x4, fixed_abs, tag = 'smem constant byte address 0x4 - core index']
  #allocation1 [shape = 'u32[72,128]{1,0:T(1,128)}', space=vmem, size = 0x9000, scoped, tag = 'internal scratch']
  %s0 = inlined_call_operand.hbm [shape: f32[16,32], index: 0, kind: input, shape index: {}]
  %s1 = inlined_call_operand.hbm [shape: bf16[3,128,128], index: 1, kind: input, shape index: {}]
  %s2 = inlined_call_operand.hbm [shape: f32[3,1,128], index: 2, kind: input, shape index: {}]
  %s3 = inlined_call_operand.hbm [shape: bf16[16,128], index: 3, kind: output, shape index: {}]
  %s4 = sld [smem:[#allocation0]]
  $region34: #{tpu_custom_call.1} parent=0
    _
  %s6 = ssub.s32 1, %s4
  %s7 = scalar_select 0, %s6, %s4
  $region1: #{tpu_custom_call.1} parent=0
    #allocation2 [shape = 'u8[8192]{0}', space=vmem, size = 0x2000, scoped, tag = 'input window, operand 0, single buffered']
    #allocation3 [shape = 's32[1]{0}', space=sflag, size = 0x4, scoped, tag = 'scoped memory for tpu_custom_call.1']
    #allocation4 [shape = 's32[1]{0}', space=sflag, size = 0x4, scoped, tag = 'scoped memory for tpu_custom_call.1']
    #allocation5 [shape = 'u8[98304]{0}', space=vmem, size = 0x18000, scoped, tag = 'input window, operand 1, single buffered']
    #allocation6 [shape = 's32[1]{0}', space=sflag, size = 0x4, scoped, tag = 'scoped memory for tpu_custom_call.1']
    #allocation7 [shape = 'u8[1536]{0}', space=vmem, size = 0x800, scoped, tag = 'input window, operand 2, single buffered']
    #allocation8 [shape = 'u8[4096]{0}', space=vmem, size = 0x1000, scoped, tag = 'output window, operand 0, single buffered']
    %8 = vsyncpa [#allocation3], 0
    %9 = vsyncpa [#allocation6], 0
    %10 = vsyncpa [#allocation4], 0
    // Predicated region
    $region2: #{tpu_custom_call.1} parent=1 // pred_check
      _
    $region3: #{tpu_custom_call.1} parent=1 // pred_check_branch
      %12 = sbr.rel (0) target = $region5
    $region4: #{tpu_custom_call.1} parent=1 // pred_region
      %14 = vsyncadd [#allocation3], 0
      %s15 = sshll.u32 %s0, 4
      %s16 = int_to_ptr.hbm [resolvable:$true] %s15
      %s17 = sshll.u32 [#allocation2], 4
      %s18 = int_to_ptr.vmem [resolvable:$true] %s17
      %23 = dma.hbm_to_vmem [thread:$0]  %s16, 256, %s18, [#allocation3], 128, 128, 8
    $region5: #{tpu_custom_call.1} parent=1 // pred_fallthru
      _
    // Predicated region
    $region6: #{tpu_custom_call.1} parent=1 // pred_check
      _
    $region7: #{tpu_custom_call.1} parent=1 // pred_check_branch
      %25 = sbr.rel (0) target = $region9
    $region8: #{tpu_custom_call.1} parent=1 // pred_region
      %27 = vsyncadd [#allocation6], 0
      %s28 = sshll.u32 %s1, 4
      %s29 = int_to_ptr.hbm [resolvable:$true] %s28
      %s30 = sshll.u32 [#allocation5], 4
      %s31 = int_to_ptr.vmem [resolvable:$true] %s30
      %36 = dma.hbm_to_vmem [thread:$0]  %s29, 3072, %s31, [#allocation6], 64, 64, 4
    $region9: #{tpu_custom_call.1} parent=1 // pred_fallthru
      _
    // Predicated region
    $region10: #{tpu_custom_call.1} parent=1 // pred_check
      _
    $region11: #{tpu_custom_call.1} parent=1 // pred_check_branch
      %38 = sbr.rel (0) target = $region13
    $region12: #{tpu_custom_call.1} parent=1 // pred_region
      %40 = vsyncadd [#allocation6], 0
      %s41 = sshll.u32 %s2, 4
      %s42 = int_to_ptr.hbm [resolvable:$true] %s41
      %s43 = sshll.u32 [#allocation7], 4
      %s44 = int_to_ptr.vmem [resolvable:$true] %s43
      %49 = dma.hbm_to_vmem [thread:$0]  %s42, 48, %s44, [#allocation6], 16, 16, 1
    $region13: #{tpu_custom_call.1} parent=1 // pred_fallthru
      _
    // Predicated region
    $region14: #{tpu_custom_call.1} parent=1 // pred_check
      _
    $region15: #{tpu_custom_call.1} parent=1 // pred_check_branch
      %51 = sbr.rel (0) target = $region17
    $region16: #{tpu_custom_call.1} parent=1 // pred_region
      %53 = dma.done [#allocation3], 256
    $region17: #{tpu_custom_call.1} parent=1 // pred_fallthru
      _
    // Predicated region
    $region18: #{tpu_custom_call.1} parent=1 // pred_check
      _
    $region19: #{tpu_custom_call.1} parent=1 // pred_check_branch
      %55 = sbr.rel (0) target = $region21
    $region20: #{tpu_custom_call.1} parent=1 // pred_region
      %57 = dma.done [#allocation6], 3072
    $region21: #{tpu_custom_call.1} parent=1 // pred_fallthru
      _
    // Predicated region
    $region22: #{tpu_custom_call.1} parent=1 // pred_check
      _
    $region23: #{tpu_custom_call.1} parent=1 // pred_check_branch
      %59 = sbr.rel (0) target = $region25
    $region24: #{tpu_custom_call.1} parent=1 // pred_region
      %61 = dma.done [#allocation6], 48
    $region25: #{tpu_custom_call.1} parent=1 // pred_fallthru
      _
    %v63 = vld [vmem:[#allocation2] sm:$0xff]
    %v64 = vld [vmem:[#allocation2 + $0x8] sm:$0xff]
    %v65 = vpack.c.bf16 %v64, %v63
    %v66 = vld [vmem:[#allocation5] sm:$0xf]
    %v67 = vld [vmem:[#allocation5 + $0x4] sm:$0xf]
    %v68 = vld [vmem:[#allocation5 + $0x8] sm:$0xf]
    %v69 = vld [vmem:[#allocation5 + $0xc] sm:$0xf]
    %v70 = vld [vmem:[#allocation7] sm:$0x1]
    %v72 = vperm.slane %v70, 0
    %v78 = vunpack.c.l.b16 %v66
    %v79 = vunpack.c.l.b16 %v67
    %v80 = vunpack.c.l.b16 %v68
    %v81 = vunpack.c.l.b16 %v69
    %v82 = vpack.c.b16 %v79, %v78
    %v83 = vpack.c.b16 %v81, %v80
    %vm86 = vcmask 261120
    %v88 = vsel %vm86, %v65, 0
    %90 = vmatpush.bf16.msra.mxu0 0
    %91 = vmatpush.bf16.msra.mxu0 0
    %92 = vmatpush.bf16.msra.mxu0 0
    %93 = vmatpush.bf16.msra.mxu0 0
    %94 = vmatpush.bf16.msra.mxu0 0
    %95 = vmatpush.bf16.msra.mxu0 0
    %96 = vmatpush.bf16.msra.mxu0 %v83
    %97 = vmatpush.bf16.msra.mxu0 %v82
    %98 = vmatmul.bf16.gmra.mxu0 %v88
    %v99 = vpop.f32.mrf.mxu0
    %v100 = vadd.f32 %v72, %v99
    %v101 = vpop.f32.mrf.mxu0
    %v102 = vadd.f32 %v72, %v101
    %103 = vdwg.mxu0
    %v104 = vmax.f32 %v100, 0.0
    %v105 = vmax.f32 %v102, 0.0
    %v106 = vpack.c.bf16 %v105, %v104
    %s107 = scalar_lea.vmem [#allocation5], 64
    %v108 = vld [vmem:[%s107] sm:$0xf]
    %v109 = vld [vmem:[%s107 + $0x4] sm:$0xf]
    %v110 = vld [vmem:[%s107 + $0x8] sm:$0xf]
    %v111 = vld [vmem:[%s107 + $0xc] sm:$0xf]
    %v112 = vld [vmem:[%s107 + $0x10] sm:$0xf]
    %v113 = vld [vmem:[%s107 + $0x14] sm:$0xf]
    %v114 = vld [vmem:[%s107 + $0x18] sm:$0xf]
    %v115 = vld [vmem:[%s107 + $0x1c] sm:$0xf]
    %v116 = vld [vmem:[%s107 + $0x20] sm:$0xf]
    %v117 = vld [vmem:[%s107 + $0x24] sm:$0xf]
    %v118 = vld [vmem:[%s107 + $0x28] sm:$0xf]
    %v119 = vld [vmem:[%s107 + $0x2c] sm:$0xf]
    %v120 = vld [vmem:[%s107 + $0x30] sm:$0xf]
    %v121 = vld [vmem:[%s107 + $0x34] sm:$0xf]
    %v122 = vld [vmem:[%s107 + $0x38] sm:$0xf]
    %v123 = vld [vmem:[%s107 + $0x3c] sm:$0xf]
    %s124 = scalar_lea.vmem [#allocation7], 1
    %v125 = vld [vmem:[%s124] sm:$0x1]
    %v127 = vperm.slane %v125, 0
    %v145 = vunpack.c.l.b16 %v108
    %v146 = vunpack.c.l.b16 %v109
    %v147 = vunpack.c.l.b16 %v110
    %v148 = vunpack.c.l.b16 %v111
    %v149 = vunpack.c.l.b16 %v112
    %v150 = vunpack.c.l.b16 %v113
    %v151 = vunpack.c.l.b16 %v114
    %v152 = vunpack.c.l.b16 %v115
    %v153 = vunpack.c.l.b16 %v116
    %v154 = vunpack.c.l.b16 %v117
    %v155 = vunpack.c.l.b16 %v118
    %v156 = vunpack.c.l.b16 %v119
    %v157 = vunpack.c.l.b16 %v120
    %v158 = vunpack.c.l.b16 %v121
    %v159 = vunpack.c.l.b16 %v122
    %v160 = vunpack.c.l.b16 %v123
    %v161 = vpack.c.b16 %v146, %v145
    %v162 = vpack.c.b16 %v148, %v147
    %v163 = vpack.c.b16 %v150, %v149
    %v164 = vpack.c.b16 %v152, %v151
    %v165 = vpack.c.b16 %v154, %v153
    %v166 = vpack.c.b16 %v156, %v155
    %v167 = vpack.c.b16 %v158, %v157
    %v168 = vpack.c.b16 %v160, %v159
    %177 = vmatpush.bf16.msra.mxu0 %v168
    %178 = vmatpush.bf16.msra.mxu0 %v167
    %179 = vmatpush.bf16.msra.mxu0 %v166
    %180 = vmatpush.bf16.msra.mxu0 %v165
    %181 = vmatpush.bf16.msra.mxu0 %v164
    %182 = vmatpush.bf16.msra.mxu0 %v163
    %183 = vmatpush.bf16.msra.mxu0 %v162
    %184 = vmatpush.bf16.msra.mxu0 %v161
    %185 = vmatmul.bf16.gmra.mxu0 %v106
    %v186 = vpop.f32.mrf.mxu0
    %v187 = vadd.f32 %v127, %v186
    %v188 = vpop.f32.mrf.mxu0
    %v189 = vadd.f32 %v127, %v188
    %190 = vdwg.mxu0
    %v191 = vmax.f32 %v187, 0.0
    %v192 = vmax.f32 %v189, 0.0
    %v193 = vpack.c.bf16 %v192, %v191
    %s194 = scalar_lea.vmem [#allocation5], 128
    %v195 = vld [vmem:[%s194] sm:$0xf]
    %v196 = vld [vmem:[%s194 + $0x4] sm:$0xf]
    %v197 = vld [vmem:[%s194 + $0x8] sm:$0xf]
    %v198 = vld [vmem:[%s194 + $0xc] sm:$0xf]
    %v199 = vld [vmem:[%s194 + $0x10] sm:$0xf]
    %v200 = vld [vmem:[%s194 + $0x14] sm:$0xf]
    %v201 = vld [vmem:[%s194 + $0x18] sm:$0xf]
    %v202 = vld [vmem:[%s194 + $0x1c] sm:$0xf]
    %v203 = vld [vmem:[%s194 + $0x20] sm:$0xf]
    %v204 = vld [vmem:[%s194 + $0x24] sm:$0xf]
    %v205 = vld [vmem:[%s194 + $0x28] sm:$0xf]
    %v206 = vld [vmem:[%s194 + $0x2c] sm:$0xf]
    %v207 = vld [vmem:[%s194 + $0x30] sm:$0xf]
    %v208 = vld [vmem:[%s194 + $0x34] sm:$0xf]
    %v209 = vld [vmem:[%s194 + $0x38] sm:$0xf]
    %v210 = vld [vmem:[%s194 + $0x3c] sm:$0xf]
    %s211 = scalar_lea.vmem [#allocation7], 2
    %v212 = vld [vmem:[%s211] sm:$0x1]
    %v214 = vperm.slane %v212, 0
    %v232 = vunpack.c.l.b16 %v195
    %v233 = vunpack.c.l.b16 %v196
    %v234 = vunpack.c.l.b16 %v197
    %v235 = vunpack.c.l.b16 %v198
    %v236 = vunpack.c.l.b16 %v199
    %v237 = vunpack.c.l.b16 %v200
    %v238 = vunpack.c.l.b16 %v201
    %v239 = vunpack.c.l.b16 %v202
    %v240 = vunpack.c.l.b16 %v203
    %v241 = vunpack.c.l.b16 %v204
    %v242 = vunpack.c.l.b16 %v205
    %v243 = vunpack.c.l.b16 %v206
    %v244 = vunpack.c.l.b16 %v207
    %v245 = vunpack.c.l.b16 %v208
    %v246 = vunpack.c.l.b16 %v209
    %v247 = vunpack.c.l.b16 %v210
    %v248 = vpack.c.b16 %v233, %v232
    %v249 = vpack.c.b16 %v235, %v234
    %v250 = vpack.c.b16 %v237, %v236
    %v251 = vpack.c.b16 %v239, %v238
    %v252 = vpack.c.b16 %v241, %v240
    %v253 = vpack.c.b16 %v243, %v242
    %v254 = vpack.c.b16 %v245, %v244
    %v255 = vpack.c.b16 %v247, %v246
    %264 = vmatpush.bf16.msra.mxu0 %v255
    %265 = vmatpush.bf16.msra.mxu0 %v254
    %266 = vmatpush.bf16.msra.mxu0 %v253
    %267 = vmatpush.bf16.msra.mxu0 %v252
    %268 = vmatpush.bf16.msra.mxu0 %v251
    %269 = vmatpush.bf16.msra.mxu0 %v250
    %270 = vmatpush.bf16.msra.mxu0 %v249
    %271 = vmatpush.bf16.msra.mxu0 %v248
    %272 = vmatmul.bf16.gmra.mxu0 %v193
    %v273 = vpop.f32.mrf.mxu0
    %v274 = vadd.f32 %v214, %v273
    %v275 = vpop.f32.mrf.mxu0
    %v276 = vadd.f32 %v214, %v275
    %277 = vdwg.mxu0
    %v278 = vpack.c.bf16 %v274, %v274
    %v279 = vpack.c.bf16 %v276, %v276
    %280 = vst [vmem:[#allocation8] sm:$0xf] %v278
    %281 = vst [vmem:[#allocation8 + $0x4] sm:$0xf] %v279
    // Predicated region
    $region26: #{tpu_custom_call.1} parent=1 // pred_check
      _
    $region27: #{tpu_custom_call.1} parent=1 // pred_check_branch
      %283 = sbr.rel (0) target = $region29
    $region28: #{tpu_custom_call.1} parent=1 // pred_region
      %285 = vsyncadd [#allocation4], 0
      %s286 = sshll.u32 [#allocation8], 4
      %s287 = int_to_ptr.vmem [resolvable:$true] %s286
      %s288 = sshll.u32 %s3, 4
      %s289 = int_to_ptr.hbm [resolvable:$true] %s288
      %294 = dma.vmem_to_hbm [thread:$0]  %s287, 128, %s289, [#allocation4], 64, 64, 4
    $region29: #{tpu_custom_call.1} parent=1 // pred_fallthru
      _
    // Predicated region
    $region30: #{tpu_custom_call.1} parent=1 // pred_check
      _
    $region31: #{tpu_custom_call.1} parent=1 // pred_check_branch
      %296 = sbr.rel (0) target = $region33
    $region32: #{tpu_custom_call.1} parent=1 // pred_region
      %298 = dma.done [#allocation4], 128
    $region33: #{tpu_custom_call.1} parent=1 // pred_fallthru
      _
    %299 = vsyncpa [#allocation3], 1
    %300 = vsyncpa [#allocation6], 1
    %301 = vsyncpa [#allocation4], 1

</llo_original>
